<compile_context>
chip_gen: v7x
topology: tpu7x:2x2x1
jax: 0.10.0
libtpu: 0.0.40
codegen_flags: <defaults>
</compile_context>

<pallas_src>
import functools

import jax
import jax.numpy as jnp
from jax.experimental import pallas as pl
from jax.experimental.pallas import tpu as pltpu


def _round_up(v: int, m: int) -> int:
    return (v + m - 1) // m * m


def _lsce_tile_kernel(x_ref, t_ref, out_ref, *, smoothing: float):
    """One row-tile: x_ref (TILE_N, C), t_ref (TILE_N, 1) -> out_ref (TILE_N, 1)."""
    x = x_ref[...].astype(jnp.float32)            # (TILE_N, C)
    t = t_ref[...]                                # (TILE_N, 1) int32
    tn, c = x.shape

    # Numerically stable log-softmax pieces (no (TILE_N, C) log_prb materialized).
    m = jnp.max(x, axis=1, keepdims=True)         # (TILE_N, 1)
    z = x - m                                     # (TILE_N, C)
    lse = jnp.log(jnp.sum(jnp.exp(z), axis=1, keepdims=True))   # (TILE_N, 1)
    sum_z = jnp.sum(z, axis=1, keepdims=True)                   # (TILE_N, 1)

    # z at the target class, via lane-iota compare (one select + one reduce).
    lane_ids = jax.lax.broadcasted_iota(jnp.int32, (tn, c), 1)
    z_t = jnp.sum(jnp.where(lane_ids == t, z, 0.0), axis=1, keepdims=True)

    # Smoothed-one-hot weighted NLL, collapsed algebraically:
    #   w = one_hot*(1-eps) + (1-one_hot)*eps/(C-1)
    #   loss = -sum_j w_j * (z_j - lse)
    #        = -[ (1-eps-off_w)*(z_t - lse) + off_w*(sum_z - C*lse) ]
    eps = smoothing / c
    off_w = eps / (c - 1)
    on_w = 1.0 - eps - off_w
    per_row = -(off_w * (sum_z - c * lse) + on_w * (z_t - lse))  # (TILE_N, 1)

    out_ref[...] = per_row


def _choose_tile_n(n: int, c: int, itemsize: int) -> int:
    # Keep the double-buffered x tile within ~24 MiB so it fits comfortably on
    # v7x (64 MiB physical VMEM) as well as v5e/v6e.
    budget = 24 * (1 << 20)
    cap = max(8, (budget // max(1, 2 * c * itemsize)) // 8 * 8)
    # TODO(synk): for very large C (vocab >=128K) add a second grid axis over C
    # with an online (flash-style) lse/sum_z/z_t instead of shrinking TILE_N.
    return int(min(128, cap, _round_up(n, 8)))


def label_smoothing_cross_entropy(x, target, smoothing: float = 0.1,
                                  reduction: str = "mean"):
    """x: (N, C) float32/bfloat16 logits; target: (N,) integer class indices."""
    assert smoothing < 1.0
    n, c = x.shape
    itemsize = jnp.dtype(x.dtype).itemsize
    tile_n = _choose_tile_n(n, c, itemsize)
    n_pad = _round_up(n, tile_n)

    if n_pad != n:
        # Padded rows compute a finite (garbage) loss and are sliced off below.
        x = jnp.pad(x, ((0, n_pad - n), (0, 0)))
        target = jnp.pad(target, (0, n_pad - n))
    t2d = target.astype(jnp.int32).reshape(n_pad, 1)
    num_tiles = n_pad // tile_n

    # VMEM budget: double-buffered x tile + double-buffered (padded) target +
    # output + headroom.
    tile_bytes = 2 * tile_n * c * itemsize + 2 * tile_n * 128 * 4 + (1 << 20)
    vmem_limit = int(min(96 * (1 << 20), max(32 * (1 << 20), 4 * tile_bytes)))

    per_row = pl.pallas_call(
        functools.partial(_lsce_tile_kernel, smoothing=float(smoothing)),
        out_shape=jax.ShapeDtypeStruct((n_pad, 1), jnp.float32),
        grid=(num_tiles,),
        in_specs=[
            pl.BlockSpec((tile_n, c), lambda i: (i, 0)),
            pl.BlockSpec((tile_n, 1), lambda i: (i, 0)),
        ],
        out_specs=pl.BlockSpec((tile_n, 1), lambda i: (i, 0)),
        compiler_params=pltpu.CompilerParams(
            dimension_semantics=("parallel",),
            vmem_limit_bytes=vmem_limit,
        ),
    )(x, t2d)

    loss = per_row[:n, 0]
    if reduction == "mean":
        return jnp.mean(loss)
    elif reduction == "sum":
        return jnp.sum(loss)
    elif reduction == "none":
        return loss
    else:
        raise ValueError(f"unknown reduction: {reduction}")


def _reference(x, target, smoothing=0.1, reduction="mean"):
    # Mirrors the provided PyTorch module exactly.
    n, c = x.shape
    eps = smoothing / c
    one_hot = jax.nn.one_hot(target, c, dtype=jnp.float32)
    one_hot = one_hot * (1 - eps) + (1 - one_hot) * eps / (c - 1)
    log_prb = jax.nn.log_softmax(x.astype(jnp.float32), axis=1)
    loss = -(one_hot * log_prb).sum(axis=1)
    if reduction == "mean":
        return loss.mean()
    elif reduction == "sum":
        return loss.sum()
    return loss


if __name__ == "__main__":
    key = jax.random.PRNGKey(0)
    kx, kt = jax.random.split(key)
    N, C = 8, 32
    x = jax.random.normal(kx, (N, C), dtype=jnp.float32)
    target = jax.random.randint(kt, (N,), 0, C, dtype=jnp.int32)

    loss = label_smoothing_cross_entropy(x, target, smoothing=0.1)
    jax.block_until_ready(loss)
    ref = _reference(x, target, smoothing=0.1)
    assert jnp.allclose(loss, ref, atol=1e-5, rtol=1e-5), (loss, ref)

    # Also exercise a shape that needs row padding + multiple grid tiles.
    N2, C2 = 37, 128
    kx2, kt2 = jax.random.split(jax.random.PRNGKey(1))
    x2 = jax.random.normal(kx2, (N2, C2), dtype=jnp.float32)
    t2 = jax.random.randint(kt2, (N2,), 0, C2, dtype=jnp.int32)
    loss2 = label_smoothing_cross_entropy(x2, t2, smoothing=0.1)
    jax.block_until_ready(loss2)
    ref2 = _reference(x2, t2, smoothing=0.1)
    assert jnp.allclose(loss2, ref2, atol=1e-5, rtol=1e-5), (loss2, ref2)

    print("KERNEL_OK")
</pallas_src>

<mosaic_0001>
module attributes {stable_mosaic.version = 11 : i64} {
  func.func @_lsce_tile_kernel(%arg0: i32, %arg1: memref<8x32xf32, #tpu.memory_space<vmem>>, %arg2: memref<8x1xi32, #tpu.memory_space<vmem>>, %arg3: memref<8x1xf32, #tpu.memory_space<vmem>>) attributes {dimension_semantics = [#tpu.dimension_semantics<parallel>], iteration_bounds = array<i64: 1>, scalar_prefetch = 0 : i64, scratch_operands = 0 : i64, tpu.core_type = #tpu.core_type<tc>, window_params = [{transform_indices = @transform_0, window_bounds = array<i64: 8, 32>}, {transform_indices = @transform_1, window_bounds = array<i64: 8, 1>}, {transform_indices = @transform_2, window_bounds = array<i64: 8, 1>}]} {
    %c0 = arith.constant 0 : index
    %c0_0 = arith.constant 0 : index
    %0 = vector.load %arg1[%c0, %c0_0] : memref<8x32xf32, #tpu.memory_space<vmem>>, vector<8x32xf32>
    %c0_1 = arith.constant 0 : index
    %c0_2 = arith.constant 0 : index
    %1 = vector.load %arg2[%c0_1, %c0_2] : memref<8x1xi32, #tpu.memory_space<vmem>>, vector<8x1xi32>
    %cst = arith.constant dense<0xFF800000> : vector<8xf32>
    %2 = vector.multi_reduction <maximumf>, %0, %cst [1] : vector<8x32xf32> to vector<8xf32>
    %3 = vector.shape_cast %2 : vector<8xf32> to vector<8x1xf32>
    %4 = vector.broadcast %3 : vector<8x1xf32> to vector<8x32xf32>
    %5 = arith.subf %0, %4 : vector<8x32xf32>
    %6 = math.exp %5 : vector<8x32xf32>
    %cst_3 = arith.constant dense<0.000000e+00> : vector<8xf32>
    %7 = vector.multi_reduction <add>, %6, %cst_3 [1] : vector<8x32xf32> to vector<8xf32>
    %8 = vector.shape_cast %7 : vector<8xf32> to vector<8x1xf32>
    %9 = math.log %8 : vector<8x1xf32>
    %cst_4 = arith.constant dense<0.000000e+00> : vector<8xf32>
    %10 = vector.multi_reduction <add>, %5, %cst_4 [1] : vector<8x32xf32> to vector<8xf32>
    %11 = vector.shape_cast %10 : vector<8xf32> to vector<8x1xf32>
    %12 = tpu.iota {dimensions = array<i32: 1>} : vector<8x32xi32>
    %13 = vector.broadcast %1 : vector<8x1xi32> to vector<8x32xi32>
    %14 = arith.cmpi eq, %12, %13 : vector<8x32xi32>
    %cst_5 = arith.constant 0.000000e+00 : f32
    %15 = vector.broadcast %cst_5 : f32 to vector<8x32xf32>
    %16 = arith.select %14, %5, %15 : vector<8x32xi1>, vector<8x32xf32>
    %cst_6 = arith.constant dense<0.000000e+00> : vector<8xf32>
    %17 = vector.multi_reduction <add>, %16, %cst_6 [1] : vector<8x32xf32> to vector<8xf32>
    %18 = vector.shape_cast %17 : vector<8xf32> to vector<8x1xf32>
    %cst_7 = arith.constant 3.200000e+01 : f32
    %19 = vector.broadcast %cst_7 : f32 to vector<8x1xf32>
    %20 = arith.mulf %19, %9 : vector<8x1xf32>
    %21 = arith.subf %11, %20 : vector<8x1xf32>
    %cst_8 = arith.constant 1.0080645E-4 : f32
    %22 = vector.broadcast %cst_8 : f32 to vector<8x1xf32>
    %23 = arith.mulf %22, %21 : vector<8x1xf32>
    %24 = arith.subf %18, %9 : vector<8x1xf32>
    %cst_9 = arith.constant 0.996774196 : f32
    %25 = vector.broadcast %cst_9 : f32 to vector<8x1xf32>
    %26 = arith.mulf %25, %24 : vector<8x1xf32>
    %27 = arith.addf %23, %26 : vector<8x1xf32>
    %cst_10 = arith.constant 0.000000e+00 : f32
    %28 = vector.broadcast %cst_10 : f32 to vector<8x1xf32>
    %29 = arith.subf %28, %27 : vector<8x1xf32>
    %c0_11 = arith.constant 0 : index
    %c0_12 = arith.constant 0 : index
    %30 = vector.load %arg3[%c0_11, %c0_12] : memref<8x1xf32, #tpu.memory_space<vmem>>, vector<8x1xf32>
    tpu.vector_store %arg3[%c0_11, %c0_12], %29 {strides = array<i32>} : memref<8x1xf32, #tpu.memory_space<vmem>>, vector<8x1xf32>,
    return
  }
  func.func @transform_0(%arg0: i32) -> (i32, i32) {
    %c0_i32 = arith.constant 0 : i32
    %c0_i32_0 = arith.constant 0 : i32
    return %arg0, %c0_i32 : i32, i32
  }
  func.func @transform_1(%arg0: i32) -> (i32, i32) {
    %c0_i32 = arith.constant 0 : i32
    %c0_i32_0 = arith.constant 0 : i32
    return %arg0, %c0_i32 : i32, i32
  }
  func.func @transform_2(%arg0: i32) -> (i32, i32) {
    %c0_i32 = arith.constant 0 : i32
    %c0_i32_0 = arith.constant 0 : i32
    return %arg0, %c0_i32 : i32, i32
  }
}

</mosaic_0001>

<llo_original>
// kernel: tpu_custom_call.1
$region0: #{tpu_custom_call.1}
  #allocation0 [shape = 'u32[]', space=smem, size = 0x4, offset = 0x4, fixed_abs, tag = 'smem constant byte address 0x4 - core index']
  #allocation1 [shape = 'u32[144,128]{1,0:T(1,128)}', space=vmem, size = 0x12000, scoped, tag = 'internal scratch']
  %s0 = inlined_call_operand.vmem [shape: f32[8,32], index: 0, kind: input, shape index: {}]
  %s1 = inlined_call_operand.vmem [shape: s32[8,1], index: 1, kind: input, shape index: {}]
  %s2 = inlined_call_operand.vmem [shape: f32[8,1], index: 2, kind: output, shape index: {}]
  %s3 = sld [smem:[#allocation0]]
  $region18: #{tpu_custom_call.1} parent=0
    _
  %s5 = ssub.s32 1, %s3
  %s6 = scalar_select 0, %s5, %s3
  // Predicated region
  $region2: #{tpu_custom_call.1} parent=0 // pred_check
    _
  $region3: #{tpu_custom_call.1} parent=0 // pred_check_branch
    %8 = sbr.rel (0) target = $region5
  $region4: #{tpu_custom_call.1} parent=0 // pred_region
    _
  $region5: #{tpu_custom_call.1} parent=0 // pred_fallthru
    _
  // Predicated region
  $region6: #{tpu_custom_call.1} parent=0 // pred_check
    _
  $region7: #{tpu_custom_call.1} parent=0 // pred_check_branch
    %10 = sbr.rel (0) target = $region9
  $region8: #{tpu_custom_call.1} parent=0 // pred_region
    _
  $region9: #{tpu_custom_call.1} parent=0 // pred_fallthru
    _
  %v11 = vld [vmem:[%s0] sm:$0xff]
  %v12 = vld [vmem:[%s1] sm:$0xff]
  %vm13 = vcmask 261120
  %v14 = vsel %vm13, %v11, -inf
  %15 = vmax.xlane.f32.xlu0 %v14
  %v16 = vpop.xlane.xlu0 %15
  %v17 = vsub.f32 %v11, %v16
  %v18 = vmul.f32 %v17, 1.442695
  %v19 = vpow.pop %v18
  %v20 = vsel %vm13, %v19, 0.0
  %21 = vadd.xlane.f32.xlu0 %v20
  %v22 = vpop.xlane.xlu0 %21
  %v23 = vlog2.pop %v22
  %v24 = vmul.f32 %v23, 0.6931472
  %v25 = vsel %vm13, %v17, 0.0
  %26 = vadd.xlane.f32.xlu0 %v25
  %v27 = vpop.xlane.xlu0 %26
  %v28 = vlaneseq
  %v29 = vand.u32 %v28, 127
  %30 = vset.pattern.permute.xlu0 0
  %31 = vperm.xlu0 %30, %v12
  %v32 = vpop.permute.xlu0 %31
  %vm33 = vcmp.eq.s32.totalorder %v29, %v32
  %v34 = vsel %vm33, %v17, 0.0
  %v35 = vsel %vm13, %v34, 0.0
  %36 = vadd.xlane.f32.xlu0 %v35
  %v37 = vpop.xlane.xlu0 %36
  %v38 = vmul.f32 %v24, 32.0
  %v39 = vsub.f32 %v27, %v38
  %v40 = vmul.f32 %v39, 0.00010080645
  %v41 = vsub.f32 %v37, %v24
  %v42 = vmul.f32 %v41, 0.9967742
  %v43 = vadd.f32 %v40, %v42
  %v44 = vsub.f32 0.0, %v43
  %vm45 = vcmask 7168
  %46 = vst.msk [vmem:[%s2] sm:$0xff] %vm45, %v44
  // Predicated region
  $region10: #{tpu_custom_call.1} parent=0 // pred_check
    _
  $region11: #{tpu_custom_call.1} parent=0 // pred_check_branch
    %48 = sbr.rel (0) target = $region13
  $region12: #{tpu_custom_call.1} parent=0 // pred_region
    _
  $region13: #{tpu_custom_call.1} parent=0 // pred_fallthru
    _
  // Predicated region
  $region14: #{tpu_custom_call.1} parent=0 // pred_check
    _
  $region15: #{tpu_custom_call.1} parent=0 // pred_check_branch
    %50 = sbr.rel (0) target = $region17
  $region16: #{tpu_custom_call.1} parent=0 // pred_region
    _
  $region17: #{tpu_custom_call.1} parent=0 // pred_fallthru
    _

</llo_original>
